<compile_context>
chip_gen: v5e
topology: v5e:2x2
jax: 0.10.0
libtpu: 0.0.40
codegen_flags: <defaults>
</compile_context>

<pallas_src>
import functools
import numpy as np

import jax
import jax.numpy as jnp
from jax.experimental import pallas as pl
from jax.experimental.pallas import tpu as pltpu


# ----------------------------------------------------------------------------
# host-side helpers: byte-budget tiling + compiler params
# ----------------------------------------------------------------------------
def _budget_divisor(total, quantum, max_units, min_steps=1):
    """Largest divisor d of `total` with (d % quantum == 0 or d == total), d <= max_units,
    preferring at least `min_steps` grid steps along this axis."""
    cands = [d for d in range(1, total + 1)
             if total % d == 0 and (d % quantum == 0 or d == total)]
    fit = [d for d in cands if d <= max_units] or [min(cands)]
    pref = [d for d in fit if total // d >= min_steps]
    return max(pref) if pref else max(fit)


def _cparams(sem, est_bytes):
    """Compiler params with a VMEM limit derived from the live-byte estimate."""
    limit = int(min(64 * 2 ** 20, max(16 * 2 ** 20, 2 * int(est_bytes))))
    return pltpu.CompilerParams(dimension_semantics=sem, vmem_limit_bytes=limit)


# ----------------------------------------------------------------------------
# Pallas kernels
# ----------------------------------------------------------------------------
def _fused_unet_kernel(x_ref, b1_ref, w1_ref, w2_ref, b2_ref, o_ref, *, H, W):
    """conv3x3 -> (+ per-sample FiLM bias) -> ReLU -> conv3x3, fully fused.

    x_ref : (Cin, S) bf16 (one sample, channels on sublanes, flat spatial on lanes)
    b1_ref: (F, 1) f32 per-sample first-layer bias (base + FiLM)
    w1_ref: (9, F, Cin) f32 tap-major conv1 weights, tap t = (dy+1)*3 + (dx+1)
    w2_ref: (9, Cout, F) f32 tap-major conv2 weights
    b2_ref: (Cout, 1) f32
    o_ref : (Cout, S) f32
    """
    S = H * W
    x = x_ref[...].astype(jnp.float32)                    # (Cin, S), f32 compute

    # Hoisted border-validity masks (2 row + 2 col compares, 4 combines) applied as
    # float scales on the taps; zero-pads image borders and kills roll wrap-around.
    col = jax.lax.broadcasted_iota(jnp.int32, (1, S), 1)
    p = col // W
    q = col - p * W
    row_ok = {-1: (p >= 1).astype(jnp.float32), 0: None,
              1: (p < H - 1).astype(jnp.float32)}
    col_ok = {-1: (q >= 1).astype(jnp.float32), 0: None,
              1: (q < W - 1).astype(jnp.float32)}
    offs, masks = [], []
    for dy in (-1, 0, 1):
        for dx in (-1, 0, 1):
            m = row_ok[dy]
            if col_ok[dx] is not None:
                m = col_ok[dx] if m is None else m * col_ok[dx]
            offs.append(dy * W + dx)
            masks.append(m)

    def conv3x3(a, w_ref):
        acc = None
        for t, s in enumerate(offs):
            tap = a if s == 0 else pltpu.roll(a, (-s) % S, axis=1)   # XLU rotate
            if masks[t] is not None:
                tap = tap * masks[t]                                  # zero padding
            d = jnp.dot(w_ref[t], tap, preferred_element_type=jnp.float32)
            acc = d if acc is None else acc + d                       # 9 accumulating dots
        return acc

    h = jnp.maximum(conv3x3(x, w1_ref) + b1_ref[...], 0.0)           # conv1 + FiLM + ReLU
    o_ref[...] = conv3x3(h, w2_ref) + b2_ref[...]                    # conv2 + bias


def _rss_kernel(re_ref, im_ref, o_ref):
    """Root-sum-of-squares over coils; per-coil dense (rows, Y) tiles (full occupancy)."""
    acc = None
    for ci in range(re_ref.shape[0]):
        re = re_ref[ci]
        im = im_ref[ci]
        sq = re * re + im * im
        acc = sq if acc is None else acc + sq
    o_ref[...] = jnp.sqrt(acc)


def _dc_kernel(k0re_ref, k0im_ref, nre_ref, nim_ref, m_ref, lam_ref, ore_ref, oim_ref):
    lam = lam_ref[pl.program_id(0)]             # per-batch lambda scalar from SMEM
    inv = 1.0 / (1.0 + lam)
    # > 0.5 binarization matches the module's own torch.where(mask > 0.5, ...) convention
    keep = m_ref[...] > 0.5
    nre = nre_ref[...]
    nim = nim_ref[...]
    ore_ref[...] = jnp.where(keep, (k0re_ref[...] + lam * nre) * inv, nre)
    oim_ref[...] = jnp.where(keep, (k0im_ref[...] + lam * nim) * inv, nim)


# ----------------------------------------------------------------------------
# Pallas wrappers
# ----------------------------------------------------------------------------
def fused_unet(x_nchw, emb, p):
    """Stand-in Unet: conv3x3 -> (+FiLM bias) -> ReLU -> conv3x3, one fused kernel.

    x_nchw: (N, Cin, H, W) float32.  Returns (N, Cout, H, W) float32.
    """
    # TODO(synk): full multi-scale Unet definition not provided upstream; interface-
    #             compatible stand-in (conv + FiLM + conv, last layer scaled/zero-bias).
    # TODO(synk): for very large images a single (C, H*W) block may exceed VMEM; halo
    #             (overlapping) lane-splitting would be needed to tile within a sample.
    N, Cin, H, W = x_nchw.shape
    F = p['w1'].shape[-1]
    Cout = p['w2'].shape[-1]
    S = H * W

    # per-sample first-layer bias (base + FiLM); tiny -> XLA
    if emb is not None:
        film = emb.astype(jnp.float32) @ p['wf'].astype(jnp.float32) + p['bf']
        bias1 = film + p['b1'][None, :]
    else:
        bias1 = jnp.broadcast_to(p['b1'][None, :], (N, F))
    bias1 = bias1.astype(jnp.float32).reshape(N, F, 1)

    # tap-major weights: w1f[t] is the (F, Cin) weight for spatial offset t=(dy+1)*3+(dx+1)
    w1f = jnp.transpose(p['w1'].reshape(9, Cin, F), (0, 2, 1)).astype(jnp.float32)
    w2f = jnp.transpose(p['w2'].reshape(9, F, Cout), (0, 2, 1)).astype(jnp.float32)
    b2 = p['b2'].reshape(Cout, 1).astype(jnp.float32)

    # transpose-free lane-dense layout; activations streamed as bf16 (mem-bound kernel)
    x = x_nchw.reshape(N, Cin, S).astype(jnp.bfloat16)

    est = S * 4 * (2 * Cin + 3 * F + 2 * Cout + 10)      # live-byte estimate per grid step
    y = pl.pallas_call(
        functools.partial(_fused_unet_kernel, H=H, W=W),
        out_shape=jax.ShapeDtypeStruct((N, Cout, S), jnp.float32),
        grid=(N,),
        in_specs=[
            pl.BlockSpec((None, Cin, S), lambda n: (n, 0, 0)),
            pl.BlockSpec((None, F, 1), lambda n: (n, 0, 0)),
            pl.BlockSpec((9, F, Cin), lambda n: (0, 0, 0)),
            pl.BlockSpec((9, Cout, F), lambda n: (0, 0, 0)),
            pl.BlockSpec((Cout, 1), lambda n: (0, 0)),
        ],
        out_specs=pl.BlockSpec((None, Cout, S), lambda n: (n, 0, 0)),
        compiler_params=_cparams(("parallel",), est),
    )(x, bias1, w1f, w2f, b2)
    return y.reshape(N, Cout, H, W)


def rss(x_c):
    """Root-sum-of-squares over the coil dim of complex (b, c, z, t, X, Y); natural layout."""
    b, c, z, t, X, Y = x_c.shape
    M = z * t * X
    re = x_c.real.reshape(b, c, M, Y).astype(jnp.float32)   # contiguous view, no relayout
    im = x_c.imag.reshape(b, c, M, Y).astype(jnp.float32)

    budget = 12 * 2 ** 20
    bytes_per_row = Y * 4 * (5 * c + 2)                      # 2 in (dbuf) + out + temps
    max_rc = max(1, budget // max(bytes_per_row, 1))
    min_steps = -(-4 // max(b, 1))                           # >=4 total steps when possible
    rc = _budget_divisor(M, 8, max_rc, min_steps=min_steps)

    out = pl.pallas_call(
        _rss_kernel,
        out_shape=jax.ShapeDtypeStruct((b, M, Y), jnp.float32),
        grid=(b, M // rc),
        in_specs=[pl.BlockSpec((None, c, rc, Y), lambda ib, ir: (ib, 0, ir, 0)),
                  pl.BlockSpec((None, c, rc, Y), lambda ib, ir: (ib, 0, ir, 0))],
        out_specs=pl.BlockSpec((None, rc, Y), lambda ib, ir: (ib, ir, 0)),
        compiler_params=_cparams(("parallel", "parallel"), rc * bytes_per_row),
    )(re, im)
    return out.reshape(b, z, t, X, Y)


def dc_combine(k0, k_net_full, mask, lam):
    """Masked soft data-consistency blend in full k-space. lam: (b,)."""
    b, c, z, t, X, Y = k0.shape
    R, XY = c * z * t, X * Y

    def flat(v):
        return v.astype(jnp.float32).reshape(b, R, XY)

    # compact mask: only expand over X/Y line pattern, never to full k-space size
    m = mask.astype(jnp.float32)
    d0 = m.shape[0]
    if all(s == 1 for s in m.shape[1:4]):
        m3 = jnp.broadcast_to(m, (d0, 1, 1, 1, X, Y)).reshape(d0, 1, XY)
        mr = 1
    else:
        # TODO(synk): mask varying over coil/slice/time -> only the row dim is expanded.
        m3 = jnp.broadcast_to(m, (d0, c, z, t, X, Y)).reshape(d0, R, XY)
        mr = R

    # byte-budget tiling: ~14 live blocks (6 data double-buffered + mask + temps)
    budget = 12 * 2 ** 20
    cc = _budget_divisor(XY, 128, min(XY, 16384), min_steps=1)
    max_rc = max(1, budget // (56 * cc))
    rc = _budget_divisor(R, 8, max_rc, min_steps=1)

    dspec = pl.BlockSpec((None, rc, cc), lambda ib, ir, ic: (ib, ir, ic))
    m_spec = pl.BlockSpec(
        (None, rc if mr == R else 1, cc),
        lambda ib, ir, ic: (ib if d0 == b else 0, ir if mr == R else 0, ic))

    ore, oim = pl.pallas_call(
        _dc_kernel,
        out_shape=(jax.ShapeDtypeStruct((b, R, XY), jnp.float32),
                   jax.ShapeDtypeStruct((b, R, XY), jnp.float32)),
        grid=(b, R // rc, XY // cc),
        in_specs=[dspec, dspec, dspec, dspec, m_spec,
                  pl.BlockSpec(memory_space=pltpu.MemorySpace.SMEM)],
        out_specs=(dspec, dspec),
        compiler_params=_cparams(("parallel", "parallel", "parallel"), 56 * rc * cc),
    )(flat(k0.real), flat(k0.imag),
      flat(k_net_full.real), flat(k_net_full.imag),
      m3, lam.astype(jnp.float32))
    return jax.lax.complex(ore, oim).reshape(k0.shape)


# ----------------------------------------------------------------------------
# Tiny linears / MLP: intentionally left to XLA (launch overhead would dominate)
# ----------------------------------------------------------------------------
def embed_mlp(x, p):
    h = jnp.maximum(x.astype(jnp.float32) @ p['w1'] + p['b1'], 0.0)
    return h @ p['w2'] + p['b2']


# ----------------------------------------------------------------------------
# Model glue (plain JAX): FFTs, reshapes, wrappers
# ----------------------------------------------------------------------------
def scaling(kshape, scale=1.0):
    x = jnp.arange(-(kshape // 2), kshape // 2).astype(jnp.float32)
    f = 1.0 + jnp.abs(x) ** scale
    return f * (2.0 / jnp.mean(f))


def mapper(values, v):
    # TODO(synk): exact Mapper definition not available; Gaussian-RBF encoding over anchors.
    centers = jnp.asarray(values, jnp.float32)
    return jnp.exp(-0.5 * (v - centers[None, :]) ** 2)


def cnn_wrapper_forward(x, emb, x_rss, p):
    """CNNWrapper: complex (b,c,z,t,X,Y) -> complex (b,c,z,t,X,Y) with residual."""
    b, c, z, t, X, Y = x.shape
    parts = jnp.concatenate([x.real, x.imag], axis=1)              # (b, 2c, z, t, X, Y), (r c)
    net_in = jnp.transpose(parts, (0, 2, 1, 3, 4, 5)).reshape(b * z, 2 * c, t, X, Y)
    if x_rss is None:
        x_rss = rss(x)
    rss_in = x_rss.reshape(b * z, 1, t, X, Y)
    net_in = jnp.concatenate([net_in, rss_in], axis=1)             # (b*z, 2c+1, t, X, Y)
    # TODO(synk): time dim handled by folding into batch (exact Unet temporal handling unknown).
    Cin = 2 * c + 1
    net_in2d = jnp.transpose(net_in, (0, 2, 1, 3, 4)).reshape(b * z * t, Cin, X, Y)
    emb_rep = None if emb is None else jnp.repeat(emb, z * t, axis=0)
    out2d = fused_unet(net_in2d, emb_rep, p)                       # (b*z*t, 2c, X, Y)
    out = jnp.transpose(out2d.reshape(b * z, t, 2 * c, X, Y), (0, 2, 1, 3, 4))
    out = out.reshape(b, z, 2, c, t, X, Y)
    dre = jnp.transpose(out[:, :, 0], (0, 2, 1, 3, 4, 5))          # (b, c, z, t, X, Y)
    dim_ = jnp.transpose(out[:, :, 1], (0, 2, 1, 3, 4, 5))
    return x + jax.lax.complex(dre, dim_)


def k_to_net_channels(kc):
    b, c, z, t, X, Y = kc.shape
    parts = jnp.concatenate([kc.real, kc.imag], axis=1)            # (r c) channel order
    return jnp.transpose(parts, (0, 2, 3, 1, 4, 5)).reshape(b * z * t, 2 * c, X, Y)


def net_channels_to_k(arr, b, c, z, t, X, Y):
    a = arr.reshape(b, z, t, 2, c, X, Y)
    re = jnp.transpose(a[:, :, :, 0], (0, 3, 1, 2, 4, 5))
    im = jnp.transpose(a[:, :, :, 1], (0, 3, 1, 2, 4, 5))
    return jax.lax.complex(re, im)


def prepare_k0(k0, k_scaling_factor=0.0):
    prepared = jnp.fft.fftshift(jnp.fft.ifft(k0, axis=-1, norm='ortho'), axes=-2)
    prepared = k_to_net_channels(prepared)
    if k_scaling_factor:
        f = scaling(k0.shape[-2], k_scaling_factor)[:, None]
        prepared = prepared * f
    else:
        f = None
    return prepared, f


def kcnn_wrapper_forward(k, prepared_k0, f, emb, p):
    b, c, z, t, X, Y = k.shape
    kin = k_to_net_channels(jnp.fft.fftshift(k, axes=-2))
    if f is not None:
        kin = kin * f
    kin = jnp.concatenate([kin, prepared_k0], axis=1)              # (b*z*t, 4c, X, Y)
    emb_rep = None if emb is None else jnp.repeat(emb, z * t, axis=0)
    out = fused_unet(kin, emb_rep, p)                              # (b*z*t, 2c, X, Y)
    k_net = jnp.fft.fftshift(net_channels_to_k(out, b, c, z, t, X, Y), axes=-2)
    if f is not None:
        k_net = k_net * (1.0 / f)
    return k + k_net


def dc_layer(k0, k_net_hybrid, mask, zlambda, p):
    # TODO(synk): MultiCoilDCLayer source not provided; standard soft data-consistency used,
    #             with input_nn_k=(True, False) -> second input is hybrid (k along x, image along y).
    lam = jnp.abs(zlambda.astype(jnp.float32) @ p['w'] + p['b'])[:, 0]   # (b,) tiny linear -> XLA
    k_net_full = jnp.fft.fft(k_net_hybrid, axis=-1, norm='ortho')
    k_dc = dc_combine(k0, k_net_full, mask, lam)
    return jnp.fft.ifftn(k_dc, axes=(-2, -1), norm='ortho')


def cascade_forward(k, mask, params, T=2):
    b = k.shape[0]
    # conditioning info (defaults as in CascadeNet.conditioning_info)
    augmentinfo = jnp.zeros((b, 6), jnp.float32)
    acceleration = jnp.ones((b, 1), jnp.float32)
    accelerationinfo = mapper([2., 4., 6., 8., 10., 12.], acceleration)
    axis = jnp.zeros((b, 1), jnp.float32)
    axisinfo = jnp.concatenate([axis, 1.0 - axis], axis=-1)
    sliceinfo = jnp.zeros((b, 1), jnp.float32) / 10.0
    static_info = jnp.concatenate(
        [augmentinfo, axisinfo, accelerationinfo, sliceinfo], axis=-1)

    x0 = jnp.fft.ifftn(k, axes=(-2, -1), norm='ortho')
    x0_rss = rss(x0)
    xi = x0
    prepared_k0, f = prepare_k0(k)
    xs, ks = [], []
    for t in range(T):
        iteration_info = mapper([0., 1., 2., 3., 4., 5.],
                                float(t) * jnp.ones((b, 1), jnp.float32))
        z = embed_mlp(jnp.concatenate([static_info, iteration_info], axis=-1),
                      params['embed'])
        zlambda, znet, zknet = jnp.split(z, 3, axis=1)
        x_net = cnn_wrapper_forward(xi, znet, x0_rss if t == 0 else None,
                                    params['xnet'])
        k_x_net = jnp.fft.fft(x_net, axis=-2, norm='ortho')
        k_net = kcnn_wrapper_forward(k_x_net, prepared_k0, f, zknet, params['knet'])
        x_dc = dc_layer(k, k_net, mask, zlambda, params['dc'])
        xi = x_dc
        xs.append(x_net)
        ks.append(k_net)
    pred = rss(xi)
    return dict(prediction=pred, rss=x0_rss, xs=xs, ks=ks, x=xi)


# ----------------------------------------------------------------------------
# Deterministic parameter construction
# ----------------------------------------------------------------------------
def init_params(key, Nc=2, embed_dim=48, filters=8,
                xnet_init=1.0, knet_init=0.01, lambda_init=1e-6):
    ks = jax.random.split(key, 9)

    def w(k, shape):
        fan_in = float(np.prod(shape[:-1]))
        return jax.random.normal(k, shape, jnp.float32) / np.sqrt(fan_in)

    emb3 = embed_dim // 3
    embed_in = 6 + 2 + 6 + 6 + 1
    return {
        'embed': dict(w1=w(ks[0], (embed_in, embed_dim)), b1=jnp.zeros((embed_dim,)),
                      w2=w(ks[1], (embed_dim, embed_dim)), b2=jnp.zeros((embed_dim,))),
        'xnet': dict(w1=w(ks[2], (3, 3, 1 + 2 * Nc, filters)), b1=jnp.zeros((filters,)),
                     wf=w(ks[3], (emb3, filters)), bf=jnp.zeros((filters,)),
                     w2=w(ks[4], (3, 3, filters, 2 * Nc)) * xnet_init,
                     b2=jnp.zeros((2 * Nc,))),
        'knet': dict(w1=w(ks[5], (3, 3, 4 * Nc, filters)), b1=jnp.zeros((filters,)),
                     wf=w(ks[6], (emb3, filters)), bf=jnp.zeros((filters,)),
                     w2=w(ks[7], (3, 3, filters, 2 * Nc)) * knet_init,
                     b2=jnp.zeros((2 * Nc,))),
        'dc': dict(w=w(ks[8], (emb3, 1)) * 0.01,
                   b=jnp.full((1,), lambda_init, jnp.float32)),
    }


# ----------------------------------------------------------------------------
if __name__ == "__main__":
    key = jax.random.PRNGKey(0)
    b, Nc, z, t, X, Y = 1, 2, 1, 4, 16, 16
    k1, k2, k3 = jax.random.split(key, 3)

    k_re = jax.random.normal(k1, (b, Nc, z, t, X, Y), jnp.float32)
    k_im = jax.random.normal(k2, (b, Nc, z, t, X, Y), jnp.float32)
    # undersampling mask along the US dim (x, axis -2): keep every other line
    lines = (jnp.arange(X) % 2 == 0).astype(jnp.float32)
    mask = lines.reshape(1, 1, 1, 1, X, 1)
    k = jax.lax.complex(k_re, k_im) * mask       # measured k-space is zero outside mask

    params = init_params(k3, Nc=Nc, embed_dim=48)
    out = cascade_forward(k, mask, params, T=2)
    jax.block_until_ready(out['prediction'])
    print("KERNEL_OK")
</pallas_src>

<mosaic_0001>
module attributes {stable_mosaic.version = 11 : i64} {
  func.func @_rss_kernel(%arg0: i32, %arg1: i32, %arg2: memref<1x2x16x16xf32, #tpu.memory_space<vmem>>, %arg3: memref<1x2x16x16xf32, #tpu.memory_space<vmem>>, %arg4: memref<1x16x16xf32, #tpu.memory_space<vmem>>) attributes {dimension_semantics = [#tpu.dimension_semantics<parallel>, #tpu.dimension_semantics<parallel>], iteration_bounds = array<i64: 1, 4>, scalar_prefetch = 0 : i64, scratch_operands = 0 : i64, tpu.core_type = #tpu.core_type<tc>, window_params = [{transform_indices = @transform_0, window_bounds = array<i64: 1, 2, 16, 16>}, {transform_indices = @transform_1, window_bounds = array<i64: 1, 2, 16, 16>}, {transform_indices = @transform_2, window_bounds = array<i64: 1, 16, 16>}]} {
    %c0 = arith.constant 0 : index
    %c0_0 = arith.constant 0 : index
    %c0_1 = arith.constant 0 : index
    %c0_2 = arith.constant 0 : index
    %0 = vector.load %arg2[%c0, %c0_0, %c0_1, %c0_2] : memref<1x2x16x16xf32, #tpu.memory_space<vmem>>, vector<1x1x16x16xf32>
    %1 = vector.shape_cast %0 : vector<1x1x16x16xf32> to vector<16x16xf32>
    %c0_3 = arith.constant 0 : index
    %c0_4 = arith.constant 0 : index
    %c0_5 = arith.constant 0 : index
    %c0_6 = arith.constant 0 : index
    %2 = vector.load %arg3[%c0_3, %c0_4, %c0_5, %c0_6] : memref<1x2x16x16xf32, #tpu.memory_space<vmem>>, vector<1x1x16x16xf32>
    %3 = vector.shape_cast %2 : vector<1x1x16x16xf32> to vector<16x16xf32>
    %4 = arith.mulf %1, %1 : vector<16x16xf32>
    %5 = arith.mulf %3, %3 : vector<16x16xf32>
    %6 = arith.addf %4, %5 : vector<16x16xf32>
    %c0_7 = arith.constant 0 : index
    %c1 = arith.constant 1 : index
    %c0_8 = arith.constant 0 : index
    %c0_9 = arith.constant 0 : index
    %7 = vector.load %arg2[%c0_7, %c1, %c0_8, %c0_9] : memref<1x2x16x16xf32, #tpu.memory_space<vmem>>, vector<1x1x16x16xf32>
    %8 = vector.shape_cast %7 : vector<1x1x16x16xf32> to vector<16x16xf32>
    %c0_10 = arith.constant 0 : index
    %c1_11 = arith.constant 1 : index
    %c0_12 = arith.constant 0 : index
    %c0_13 = arith.constant 0 : index
    %9 = vector.load %arg3[%c0_10, %c1_11, %c0_12, %c0_13] : memref<1x2x16x16xf32, #tpu.memory_space<vmem>>, vector<1x1x16x16xf32>
    %10 = vector.shape_cast %9 : vector<1x1x16x16xf32> to vector<16x16xf32>
    %11 = arith.mulf %8, %8 : vector<16x16xf32>
    %12 = arith.mulf %10, %10 : vector<16x16xf32>
    %13 = arith.addf %11, %12 : vector<16x16xf32>
    %14 = arith.addf %6, %13 : vector<16x16xf32>
    %15 = math.sqrt %14 : vector<16x16xf32>
    %c0_14 = arith.constant 0 : index
    %c0_15 = arith.constant 0 : index
    %c0_16 = arith.constant 0 : index
    %16 = vector.load %arg4[%c0_14, %c0_15, %c0_16] : memref<1x16x16xf32, #tpu.memory_space<vmem>>, vector<1x16x16xf32>
    %17 = vector.shape_cast %16 : vector<1x16x16xf32> to vector<16x16xf32>
    %18 = vector.shape_cast %15 : vector<16x16xf32> to vector<1x16x16xf32>
    tpu.vector_store %arg4[%c0_14, %c0_15, %c0_16], %18 {strides = array<i32>} : memref<1x16x16xf32, #tpu.memory_space<vmem>>, vector<1x16x16xf32>,
    return
  }
  func.func @transform_0(%arg0: i32, %arg1: i32) -> (i32, i32, i32, i32) {
    %c0_i32 = arith.constant 0 : i32
    %c0_i32_0 = arith.constant 0 : i32
    %c0_i32_1 = arith.constant 0 : i32
    return %arg0, %c0_i32, %arg1, %c0_i32_0 : i32, i32, i32, i32
  }
  func.func @transform_1(%arg0: i32, %arg1: i32) -> (i32, i32, i32, i32) {
    %c0_i32 = arith.constant 0 : i32
    %c0_i32_0 = arith.constant 0 : i32
    %c0_i32_1 = arith.constant 0 : i32
    return %arg0, %c0_i32, %arg1, %c0_i32_0 : i32, i32, i32, i32
  }
  func.func @transform_2(%arg0: i32, %arg1: i32) -> (i32, i32, i32) {
    %c0_i32 = arith.constant 0 : i32
    %c0_i32_0 = arith.constant 0 : i32
    return %arg0, %arg1, %c0_i32 : i32, i32, i32
  }
}

</mosaic_0001>

<llo_original>
// kernel: tpu_custom_call.1
$region0: #{tpu_custom_call.1}
  #allocation0 [shape = 'u32[]', space=smem, size = 0x4, offset = 0x4, fixed_abs, tag = 'smem constant byte address 0x4 - core index']
  #allocation1 [shape = 'u32[72,128]{1,0:T(1,128)}', space=vmem, size = 0x9000, scoped, tag = 'internal scratch']
  %s0 = inlined_call_operand.vmem [shape: f32[1,2,64,16], index: 0, kind: input, shape index: {}]
  %s1 = inlined_call_operand.vmem [shape: f32[1,2,64,16], index: 1, kind: input, shape index: {}]
  %s2 = inlined_call_operand.vmem [shape: f32[1,64,16], index: 2, kind: output, shape index: {}]
  %s3 = sld [smem:[#allocation0]]
  $region117: #{tpu_custom_call.1} parent=0
    _
  %s5 = ssub.s32 1, %s3
  %s6 = scalar_select 0, %s5, %s3
  $region1: #{tpu_custom_call.1} parent=0
    #allocation2 [shape = 'u8[32768]{0}', space=vmem, size = 0x8000, scoped, tag = 'input window, operand 0']
    #allocation3 [shape = 'u8[32768]{0}', space=vmem, size = 0x8000, scoped, tag = 'input window, operand 1']
    loop: start=0, step=1, limit=6
    $region2: #{tpu_custom_call.1} parent=1 // loop_pre_header
      _
    $region3: #{tpu_custom_call.1} parent=1 // loop_header
      %s8 = sphi 0, %s12
      %p9 = scmp.ge.s32.totalorder %s8, 6
      %s15 = sphi 0, %s27
      %s16 = sphi 0, %s23
      %s17 = sphi 0, %s15
      %s18 = sphi 0, %s16
      %s19 = sphi 0, %s17
      %s20 = sphi 0, %s18
      %s32 = sphi 0, %s34
      %s35 = sphi 0, %s32
      %s36 = sphi 0, %s35
      %s52 = sphi 0, %s36
      %s60 = sphi 0, %s62
      %s63 = sphi 0, %s60
      %s64 = sphi 0, %s63
      %s80 = sphi 0, %s64
      %s88 = sphi 0, %s90
      %s91 = sphi 0, %s88
      %s92 = sphi 0, %s91
      %s108 = sphi 0, %s92
    $region4: #{tpu_custom_call.1} parent=1 // loop_header_branch
      %11 = sbr.rel (%p9) target = $region8
    $region5: #{tpu_custom_call.1} parent=1 // loop_body
      %s13 = ssub.s32 %s8, 1
      %s14 = ssub.s32 %s8, 2
      %s21 = sadd.s32 1, %s16
      %p22 = scmp.ge.s32.totalorder %s21, 4
      %s23 = scalar_select %p22, 0, %s21
      %s24 = sadd.s32 1, %s15
      %s25 = scalar_select %p22, %s24, %s15
      %p26 = scmp.ge.s32.totalorder %s25, 1
      %s27 = scalar_select %p26, 0, %s25
      %s28 = ssub.s32 %s15, %s27
      %s29 = ssub.s32 %s16, %s23
      %s30 = sor.u32 %s28, %s29
      %p31 = scmp.eq.s32.totalorder %s30, 0
      %s33 = sadd.s32 %s32, 1
      %s34 = scalar_select %p31, %s32, %s33
      %p37 = pneg %p31
      %p38 = scmp.eq.s32.totalorder %s8, 3
      %p39 = por %p37, %p38
      %p40 = scmp.ne.s32.totalorder %s32, %s35
      %p41 = scmp.eq.s32.totalorder %s8, 0
      %p42 = por %p40, %p41
      %p43 = scmp.ne.s32.totalorder %s32, %s35
      %p44 = scmp.eq.s32.totalorder %s13, 3
      %p45 = por %p43, %p44
      %p46 = scmp.ne.s32.totalorder %s35, %s36
      %p47 = scmp.eq.s32.totalorder %s13, 0
      %p48 = por %p46, %p47
      %p49 = scmp.ne.s32.totalorder %s35, %s36
      %p50 = scmp.eq.s32.totalorder %s14, 3
      %p51 = por %p49, %p50
      %p53 = scmp.ne.s32.totalorder %s36, %s52
      %p54 = scmp.eq.s32.totalorder %s14, 0
      %p55 = por %p53, %p54
      %s56 = ssub.s32 %s15, %s27
      %s57 = ssub.s32 %s16, %s23
      %s58 = sor.u32 %s56, %s57
      %p59 = scmp.eq.s32.totalorder %s58, 0
      %s61 = sadd.s32 %s60, 1
      %s62 = scalar_select %p59, %s60, %s61
      %p65 = pneg %p59
      %p66 = scmp.eq.s32.totalorder %s8, 3
      %p67 = por %p65, %p66
      %p68 = scmp.ne.s32.totalorder %s60, %s63
      %p69 = scmp.eq.s32.totalorder %s8, 0
      %p70 = por %p68, %p69
      %p71 = scmp.ne.s32.totalorder %s60, %s63
      %p72 = scmp.eq.s32.totalorder %s13, 3
      %p73 = por %p71, %p72
      %p74 = scmp.ne.s32.totalorder %s63, %s64
      %p75 = scmp.eq.s32.totalorder %s13, 0
      %p76 = por %p74, %p75
      %p77 = scmp.ne.s32.totalorder %s63, %s64
      %p78 = scmp.eq.s32.totalorder %s14, 3
      %p79 = por %p77, %p78
      %p81 = scmp.ne.s32.totalorder %s64, %s80
      %p82 = scmp.eq.s32.totalorder %s14, 0
      %p83 = por %p81, %p82
      %s84 = ssub.s32 %s15, %s27
      %s85 = ssub.s32 %s16, %s23
      %s86 = sor.u32 %s84, %s85
      %p87 = scmp.eq.s32.totalorder %s86, 0
      %s89 = sadd.s32 %s88, 1
      %s90 = scalar_select %p87, %s88, %s89
      %p93 = pneg %p87
      %p94 = scmp.eq.s32.totalorder %s8, 3
      %p95 = por %p93, %p94
      %p96 = scmp.ne.s32.totalorder %s88, %s91
      %p97 = scmp.eq.s32.totalorder %s8, 0
      %p98 = por %p96, %p97
      %p99 = scmp.ne.s32.totalorder %s88, %s91
      %p100 = scmp.eq.s32.totalorder %s13, 3
      %p101 = por %p99, %p100
      %p102 = scmp.ne.s32.totalorder %s91, %s92
      %p103 = scmp.eq.s32.totalorder %s13, 0
      %p104 = por %p102, %p103
      %p105 = scmp.ne.s32.totalorder %s91, %s92
      %p106 = scmp.eq.s32.totalorder %s14, 3
      %p107 = por %p105, %p106
      %p109 = scmp.ne.s32.totalorder %s92, %s108
      %p110 = scmp.eq.s32.totalorder %s14, 0
      %p111 = por %p109, %p110
      %p112 = scmp.le.s32.totalorder 1, %s8
      %p113 = scmp.lt.s32.totalorder %s8, 5
      %p114 = pnand %p112, %p113
      %p115 = pneg %p114
      // Predicated region
      $region9: #{tpu_custom_call.1} parent=5 // pred_check
        _
      $region10: #{tpu_custom_call.1} parent=5 // pred_check_branch
        %117 = sbr.rel (%p114) target = $region12
      $region11: #{tpu_custom_call.1} parent=5 // pred_region
        %s118 = ssub.s32 %s8, 1
      $region12: #{tpu_custom_call.1} parent=5 // pred_fallthru
        _
      %p119 = scmp.lt.s32.totalorder %s8, 4
      // Predicated region
      $region13: #{tpu_custom_call.1} parent=5 // pred_check
        %p120 = pneg %p119
      $region14: #{tpu_custom_call.1} parent=5 // pred_check_branch
        %122 = sbr.rel (%p120) target = $region16
      $region15: #{tpu_custom_call.1} parent=5 // pred_region
        // Predicated region
        $region17: #{tpu_custom_call.1} parent=15 // pred_check
          %p123 = pneg %p42
        $region18: #{tpu_custom_call.1} parent=15 // pred_check_branch
          %125 = sbr.rel (%p123) target = $region20
        $region19: #{tpu_custom_call.1} parent=15 // pred_region
          %s126 = sand.u32 %s32, 1
          %s127 = sand.u32 %s32, 1
          %s128 = smul.addr %s127, 32
          %s129 = scalar_lea.vmem [#allocation2], %s128
          %s130 = smul.u32 2, %s16
          %s131 = smul.addr %s15, 16
          %s132 = sadd.s32 %s130, %s131
          %s133 = smul.addr %s132, 8
          %s134 = scalar_lea.vmem %s0, %s133
          // Predicated region
          $region21: #{tpu_custom_call.1} parent=19 // pred_check
            _
          $region22: #{tpu_custom_call.1} parent=19 // pred_check_branch
            %136 = sbr.rel (0) target = $region24
          $region23: #{tpu_custom_call.1} parent=19 // pred_region
            // Predicated region
            $region25: #{tpu_custom_call.1} parent=23 // pred_check
              _
            $region26: #{tpu_custom_call.1} parent=23 // pred_check_branch
              %138 = sbr.rel (0) target = $region28
            $region27: #{tpu_custom_call.1} parent=23 // pred_region
              // Predicated region
              $region40: #{tpu_custom_call.1} parent=27 // pred_check
                _
              $region41: #{tpu_custom_call.1} parent=27 // pred_check_branch
                %160 = sbr.rel (0) target = $region43
              $region42: #{tpu_custom_call.1} parent=27 // pred_region
                loop: start=0, step=1, limit=1
                $region44: #{tpu_custom_call.1} parent=42 // loop_pre_header
                  _
                $region45: #{tpu_custom_call.1} parent=42 // loop_header
                  %s162 = sphi 0, %s166
                  %p163 = scmp.ge.s32.totalorder %s162, 1
                  %s167 = sphi %s134, %s134
                  %s168 = sphi %s129, %s129
                $region46: #{tpu_custom_call.1} parent=42 // loop_header_branch
                  %165 = sbr.rel (%p163) target = $region50
                $region47: #{tpu_custom_call.1} parent=42 // loop_body
                  %v169 = vld [vmem:[%s167] sm:$0xff]
                  %170 = vst [vmem:[%s168] sm:$0xff] %v169
                  %v171 = vld [vmem:[%s167 + $0x8] sm:$0xff]
                  %172 = vst [vmem:[%s168 + $0x8] sm:$0xff] %v171
                  %v173 = vld [vmem:[%s167 + $0x40] sm:$0xff]
                  %174 = vst [vmem:[%s168 + $0x10] sm:$0xff] %v173
                  %v175 = vld [vmem:[%s167 + $0x48] sm:$0xff]
                  %176 = vst [vmem:[%s168 + $0x18] sm:$0xff] %v175
                $region48: #{tpu_custom_call.1} parent=42 // loop_footer
                  %s166 = sadd.s32 1, %s162
                $region49: #{tpu_custom_call.1} parent=42 // loop_footer_branch
                  %161 = sbr.rel target = $region45
                $region50: #{tpu_custom_call.1} parent=42 // loop_exit
                  _
              $region43: #{tpu_custom_call.1} parent=27 // pred_fallthru
                _
              // Predicated region
              $region51: #{tpu_custom_call.1} parent=27 // pred_check
                _
              $region52: #{tpu_custom_call.1} parent=27 // pred_check_branch
                %178 = sbr.rel target = $region54
              $region53: #{tpu_custom_call.1} parent=27 // pred_region
                _
              $region54: #{tpu_custom_call.1} parent=27 // pred_fallthru
                _
            $region28: #{tpu_custom_call.1} parent=23 // pred_fallthru
              _
            // Predicated region
            $region29: #{tpu_custom_call.1} parent=23 // pred_check
              _
            $region30: #{tpu_custom_call.1} parent=23 // pred_check_branch
              %140 = sbr.rel target = $region32
            $region31: #{tpu_custom_call.1} parent=23 // pred_region
              %s142 = ssub.s32 256, 1
              loop: start=0, step=1, limit=1
              $region33: #{tpu_custom_call.1} parent=31 // loop_pre_header
                _
              $region34: #{tpu_custom_call.1} parent=31 // loop_header
                %s144 = sphi 0, %s148
                %p145 = scmp.ge.s32.totalorder %s144, 1
                %s149 = sphi %s134, %s134
                %s150 = sphi %s129, %s129
              $region35: #{tpu_custom_call.1} parent=31 // loop_header_branch
                %147 = sbr.rel (%p145) target = $region39
              $region36: #{tpu_custom_call.1} parent=31 // loop_body
                %v151 = vld [vmem:[%s149] sm:%s142]
                %152 = vst [vmem:[%s150] sm:%s142] %v151
                %v153 = vld [vmem:[%s149 + $0x8] sm:%s142]
                %154 = vst [vmem:[%s150 + $0x8] sm:%s142] %v153
                %v155 = vld [vmem:[%s149 + $0x40] sm:%s142]
                %156 = vst [vmem:[%s150 + $0x10] sm:%s142] %v155
                %v157 = vld [vmem:[%s149 + $0x48] sm:%s142]
                %158 = vst [vmem:[%s150 + $0x18] sm:%s142] %v157
              $region37: #{tpu_custom_call.1} parent=31 // loop_footer
                %s148 = sadd.s32 1, %s144
              $region38: #{tpu_custom_call.1} parent=31 // loop_footer_branch
                %143 = sbr.rel target = $region34
              $region39: #{tpu_custom_call.1} parent=31 // loop_exit
                _
            $region32: #{tpu_custom_call.1} parent=23 // pred_fallthru
              _
          $region24: #{tpu_custom_call.1} parent=19 // pred_fallthru
            _
          %179 = vnop
        $region20: #{tpu_custom_call.1} parent=15 // pred_fallthru
          _
        // Predicated region
        $region55: #{tpu_custom_call.1} parent=15 // pred_check
          %p180 = pneg %p70
        $region56: #{tpu_custom_call.1} parent=15 // pred_check_branch
          %182 = sbr.rel (%p180) target = $region58
        $region57: #{tpu_custom_call.1} parent=15 // pred_region
          %s183 = sand.u32 %s60, 1
          %s184 = sand.u32 %s60, 1
          %s185 = smul.addr %s184, 32
          %s186 = scalar_lea.vmem [#allocation3], %s185
          %s187 = smul.u32 2, %s16
          %s188 = smul.addr %s15, 16
          %s189 = sadd.s32 %s187, %s188
          %s190 = smul.addr %s189, 8
          %s191 = scalar_lea.vmem %s1, %s190
          // Predicated region
          $region59: #{tpu_custom_call.1} parent=57 // pred_check
            _
          $region60: #{tpu_custom_call.1} parent=57 // pred_check_branch
            %193 = sbr.rel (0) target = $region62
          $region61: #{tpu_custom_call.1} parent=57 // pred_region
            // Predicated region
            $region63: #{tpu_custom_call.1} parent=61 // pred_check
              _
            $region64: #{tpu_custom_call.1} parent=61 // pred_check_branch
              %195 = sbr.rel (0) target = $region66
            $region65: #{tpu_custom_call.1} parent=61 // pred_region
              // Predicated region
              $region78: #{tpu_custom_call.1} parent=65 // pred_check
                _
              $region79: #{tpu_custom_call.1} parent=65 // pred_check_branch
                %217 = sbr.rel (0) target = $region81
              $region80: #{tpu_custom_call.1} parent=65 // pred_region
                loop: start=0, step=1, limit=1
                $region82: #{tpu_custom_call.1} parent=80 // loop_pre_header
                  _
                $region83: #{tpu_custom_call.1} parent=80 // loop_header
                  %s219 = sphi 0, %s223
                  %p220 = scmp.ge.s32.totalorder %s219, 1
                  %s224 = sphi %s191, %s191
                  %s225 = sphi %s186, %s186
                $region84: #{tpu_custom_call.1} parent=80 // loop_header_branch
                  %222 = sbr.rel (%p220) target = $region88
                $region85: #{tpu_custom_call.1} parent=80 // loop_body
                  %v226 = vld [vmem:[%s224] sm:$0xff]
                  %227 = vst [vmem:[%s225] sm:$0xff] %v226
                  %v228 = vld [vmem:[%s224 + $0x8] sm:$0xff]
                  %229 = vst [vmem:[%s225 + $0x8] sm:$0xff] %v228
                  %v230 = vld [vmem:[%s224 + $0x40] sm:$0xff]
                  %231 = vst [vmem:[%s225 + $0x10] sm:$0xff] %v230
                  %v232 = vld [vmem:[%s224 + $0x48] sm:$0xff]
                  %233 = vst [vmem:[%s225 + $0x18] sm:$0xff] %v232
                $region86: #{tpu_custom_call.1} parent=80 // loop_footer
                  %s223 = sadd.s32 1, %s219
                $region87: #{tpu_custom_call.1} parent=80 // loop_footer_branch
                  %218 = sbr.rel target = $region83
                $region88: #{tpu_custom_call.1} parent=80 // loop_exit
                  _
              $region81: #{tpu_custom_call.1} parent=65 // pred_fallthru
                _
              // Predicated region
              $region89: #{tpu_custom_call.1} parent=65 // pred_check
                _
              $region90: #{tpu_custom_call.1} parent=65 // pred_check_branch
                %235 = sbr.rel target = $region92
              $region91: #{tpu_custom_call.1} parent=65 // pred_region
                _
              $region92: #{tpu_custom_call.1} parent=65 // pred_fallthru
                _
            $region66: #{tpu_custom_call.1} parent=61 // pred_fallthru
              _
            // Predicated region
            $region67: #{tpu_custom_call.1} parent=61 // pred_check
              _
            $region68: #{tpu_custom_call.1} parent=61 // pred_check_branch
              %197 = sbr.rel target = $region70
            $region69: #{tpu_custom_call.1} parent=61 // pred_region
              %s199 = ssub.s32 256, 1
              loop: start=0, step=1, limit=1
              $region71: #{tpu_custom_call.1} parent=69 // loop_pre_header
                _
              $region72: #{tpu_custom_call.1} parent=69 // loop_header
                %s201 = sphi 0, %s205
                %p202 = scmp.ge.s32.totalorder %s201, 1
                %s206 = sphi %s191, %s191
                %s207 = sphi %s186, %s186
              $region73: #{tpu_custom_call.1} parent=69 // loop_header_branch
                %204 = sbr.rel (%p202) target = $region77
              $region74: #{tpu_custom_call.1} parent=69 // loop_body
                %v208 = vld [vmem:[%s206] sm:%s199]
                %209 = vst [vmem:[%s207] sm:%s199] %v208
                %v210 = vld [vmem:[%s206 + $0x8] sm:%s199]
                %211 = vst [vmem:[%s207 + $0x8] sm:%s199] %v210
                %v212 = vld [vmem:[%s206 + $0x40] sm:%s199]
                %213 = vst [vmem:[%s207 + $0x10] sm:%s199] %v212
                %v214 = vld [vmem:[%s206 + $0x48] sm:%s199]
                %215 = vst [vmem:[%s207 + $0x18] sm:%s199] %v214
              $region75: #{tpu_custom_call.1} parent=69 // loop_footer
                %s205 = sadd.s32 1, %s201
              $region76: #{tpu_custom_call.1} parent=69 // loop_footer_branch
                %200 = sbr.rel target = $region72
              $region77: #{tpu_custom_call.1} parent=69 // loop_exit
                _
            $region70: #{tpu_custom_call.1} parent=61 // pred_fallthru
              _
          $region62: #{tpu_custom_call.1} parent=57 // pred_fallthru
            _
          %236 = vnop
        $region58: #{tpu_custom_call.1} parent=15 // pred_fallthru
          _
      $region16: #{tpu_custom_call.1} parent=5 // pred_fallthru
        _
      %p237 = scmp.le.s32.totalorder 1, %s8
      %p238 = scmp.lt.s32.totalorder %s8, 5
      %p239 = pnand %p237, %p238
      %p240 = pneg %p239
      // Predicated region
      $region93: #{tpu_custom_call.1} parent=5 // pred_check
        _
      $region94: #{tpu_custom_call.1} parent=5 // pred_check_branch
        %242 = sbr.rel (%p239) target = $region96
      $region95: #{tpu_custom_call.1} parent=5 // pred_region
        %s243 = ssub.s32 %s8, 1
        %s244 = sand.u32 %s35, 1
        %s245 = sand.u32 %s35, 1
        %s246 = smul.addr %s245, 32
        %s247 = scalar_lea.vmem [#allocation2], %s246
        // Predicated region
        $region97: #{tpu_custom_call.1} parent=95 // pred_check
          %p248 = pneg %p48
        $region98: #{tpu_custom_call.1} parent=95 // pred_check_branch
          %250 = sbr.rel (%p248) target = $region100
        $region99: #{tpu_custom_call.1} parent=95 // pred_region
          _
        $region100: #{tpu_custom_call.1} parent=95 // pred_fallthru
          _
        %s251 = sand.u32 %s63, 1
        %s252 = sand.u32 %s63, 1
        %s253 = smul.addr %s252, 32
        %s254 = scalar_lea.vmem [#allocation3], %s253
        // Predicated region
        $region101: #{tpu_custom_call.1} parent=95 // pred_check
          %p255 = pneg %p76
        $region102: #{tpu_custom_call.1} parent=95 // pred_check_branch
          %257 = sbr.rel (%p255) target = $region104
        $region103: #{tpu_custom_call.1} parent=95 // pred_region
          _
        $region104: #{tpu_custom_call.1} parent=95 // pred_fallthru
          _
        %s258 = sand.u32 %s35, 1
        %s259 = sand.u32 %s35, 1
        %s260 = smul.addr %s259, 32
        %s261 = scalar_lea.vmem [#allocation2], %s260
        %p262 = pneg %p48
        %p263 = pneg %p45
        %s264 = sand.u32 %s63, 1
        %s265 = sand.u32 %s63, 1
        %s266 = smul.addr %s265, 32
        %s267 = scalar_lea.vmem [#allocation3], %s266
        %p268 = pneg %p76
        %p269 = pneg %p73
        %p270 = pneg %p104
        %p271 = pneg %p101
        %s272 = smul.u32 2, %s18
        %p273 = scmp.lt.s32.totalorder %s17, 0
        %s274 = scalar_select %p273, %s17, 0
        %p275 = scmp.lt.s32.totalorder %s272, 7
        %s276 = scalar_select %p275, %s272, 7
        %s277 = smul.addr %s274, 8
        %s278 = sadd.s32 %s276, %s277
        %s279 = smul.addr %s278, 8
        %s280 = scalar_lea.vmem %s2, %s279
        %s281 = smul.u32 2, %s18
        %s282 = smul.u32 2, %s18
        %s283 = smul.u32 2, %s18
        %p284 = scmp.lt.s32.totalorder %s17, 0
        %s285 = scalar_select %p284, %s17, 0
        %p286 = scmp.lt.s32.totalorder %s283, 7
        %s287 = scalar_select %p286, %s283, 7
        %s288 = smul.addr %s285, 8
        %s289 = sadd.s32 %s287, %s288
        %s290 = smul.addr %s289, 8
        %s291 = scalar_lea.vmem %s2, %s290
        %s292 = smul.u32 2, %s18
        %v293 = vld [vmem:[%s247] sm:$0xff]
        %v294 = vld [vmem:[%s247 + $0x8] sm:$0xff]
        %v295 = vld [vmem:[%s254] sm:$0xff]
        %v296 = vld [vmem:[%s254 + $0x8] sm:$0xff]
        %v297 = vmul.f32 %v293, %v293
        %v298 = vmul.f32 %v294, %v294
        %v299 = vmul.f32 %v295, %v295
        %v300 = vmul.f32 %v296, %v296
        %v301 = vadd.f32 %v297, %v299
        %v302 = vadd.f32 %v298, %v300
        %s303 = scalar_lea.vmem %s247, 16 [#allocation2]
        %v304 = vld [vmem:[%s303] sm:$0xff]
        %v305 = vld [vmem:[%s303 + $0x8] sm:$0xff]
        %s306 = scalar_lea.vmem %s254, 16 [#allocation3]
        %v307 = vld [vmem:[%s306] sm:$0xff]
        %v308 = vld [vmem:[%s306 + $0x8] sm:$0xff]
        %v309 = vmul.f32 %v304, %v304
        %v310 = vmul.f32 %v305, %v305
        %v311 = vmul.f32 %v307, %v307
        %v312 = vmul.f32 %v308, %v308
        %v313 = vadd.f32 %v309, %v311
        %v314 = vadd.f32 %v310, %v312
        %v315 = vadd.f32 %v301, %v313
        %v316 = vadd.f32 %v302, %v314
        %v317 = vrsqrt.pop %v315
        %v318 = vmul.f32 %v317, %v315
        %v319 = vmul.f32 %v318, %v317
        %v320 = vmul.f32 0.5, %v319
        %v321 = vsub.f32 1.5, %v320
        %v322 = vmul.f32 %v317, %v321
        %v323 = vmul.f32 %v315, %v322
        %vm324 = vcmp.eq.f32.partialorder %v315, inf
        %v325 = vsel %vm324, %v315, %v323
        %vm326 = vcmp.eq.f32.partialorder %v315, 0.0
        %v327 = vand.u32 %v315, 2147483648
        %v328 = vsel %vm326, %v327, %v325
        %v329 = vrsqrt.pop %v316
        %v330 = vmul.f32 %v329, %v316
        %v331 = vmul.f32 %v330, %v329
        %v332 = vmul.f32 0.5, %v331
        %v333 = vsub.f32 1.5, %v332
        %v334 = vmul.f32 %v329, %v333
        %v335 = vmul.f32 %v316, %v334
        %vm336 = vcmp.eq.f32.partialorder %v316, inf
        %v337 = vsel %vm336, %v316, %v335
        %vm338 = vcmp.eq.f32.partialorder %v316, 0.0
        %v339 = vand.u32 %v316, 2147483648
        %v340 = vsel %vm338, %v339, %v337
        %vm341 = vcmask 130048
        %342 = vst.msk [vmem:[%s291] sm:$0xff] %vm341, %v328
        %343 = vst.msk [vmem:[%s291 + $0x8] sm:$0xff] %vm341, %v340
        %s344 = smul.u32 2, %s18
        %p345 = scmp.lt.s32.totalorder %s17, 0
        %s346 = scalar_select %p345, %s17, 0
        %p347 = scmp.lt.s32.totalorder %s344, 7
        %s348 = scalar_select %p347, %s344, 7
        %s349 = smul.addr %s346, 8
        %s350 = sadd.s32 %s348, %s349
        %s351 = smul.addr %s350, 8
        %s352 = scalar_lea.vmem %s2, %s351
        // Predicated region
        $region105: #{tpu_custom_call.1} parent=95 // pred_check
          %p353 = pneg %p101
        $region106: #{tpu_custom_call.1} parent=95 // pred_check_branch
          %355 = sbr.rel (%p353) target = $region108
        $region107: #{tpu_custom_call.1} parent=95 // pred_region
          %s356 = smul.u32 2, %s18
        $region108: #{tpu_custom_call.1} parent=95 // pred_fallthru
          _
      $region96: #{tpu_custom_call.1} parent=5 // pred_fallthru
        _
      %p357 = scmp.le.s32.totalorder 2, %s8
      // Predicated region
      $region109: #{tpu_custom_call.1} parent=5 // pred_check
        %p358 = pneg %p357
      $region110: #{tpu_custom_call.1} parent=5 // pred_check_branch
        %360 = sbr.rel (%p358) target = $region112
      $region111: #{tpu_custom_call.1} parent=5 // pred_region
        %s361 = ssub.s32 %s8, 2
        // Predicated region
        $region113: #{tpu_custom_call.1} parent=111 // pred_check
          %p362 = pneg %p107
        $region114: #{tpu_custom_call.1} parent=111 // pred_check_branch
          %364 = sbr.rel (%p362) target = $region116
        $region115: #{tpu_custom_call.1} parent=111 // pred_region
          %s365 = smul.u32 2, %s20
          %p366 = scmp.lt.s32.totalorder %s19, 0
          %s367 = scalar_select %p366, %s19, 0
          %p368 = scmp.lt.s32.totalorder %s365, 7
          %s369 = scalar_select %p368, %s365, 7
          %s370 = smul.addr %s367, 8
          %s371 = sadd.s32 %s369, %s370
          %s372 = smul.addr %s371, 8
          %s373 = scalar_lea.vmem %s2, %s372
        $region116: #{tpu_custom_call.1} parent=111 // pred_fallthru
          _
      $region112: #{tpu_custom_call.1} parent=5 // pred_fallthru
        _
    $region6: #{tpu_custom_call.1} parent=1 // loop_footer
      %s12 = sadd.s32 1, %s8
    $region7: #{tpu_custom_call.1} parent=1 // loop_footer_branch
      %7 = sbr.rel target = $region3
    $region8: #{tpu_custom_call.1} parent=1 // loop_exit
      _

</llo_original>
